<compile_context>
chip_gen: v5e
topology: v5e:2x2
jax: 0.10.0
libtpu: 0.0.40
codegen_flags: <defaults>
</compile_context>

<pallas_src>
import numpy as np
import jax
import jax.numpy as jnp
from jax.experimental import pallas as pl
from jax.experimental.pallas import tpu as pltpu

NEG_SLOPE = 0.2
MASK_NEG = -1e30


# ----------------------------------------------------------------------------
# Stage 1: fused projection  fh = x @ W_fused,  scores = fh @ [attn_l | attn_r]
# ----------------------------------------------------------------------------
def _proj_kernel(x_ref, w_ref, alr_ref, fh_ref, sc_ref):
    # x_ref:   (N, F_in)    node features
    # w_ref:   (F_in, H*D)  fused projection weights for all heads
    # alr_ref: (H*D, 2H)    block-diagonal [attn_l | attn_r]
    # fh_ref:  (N, H*D)     projected features (lane-dense slab)
    # sc_ref:  (N, 2H)      per-node scores [el | er]
    fh = jnp.dot(x_ref[...], w_ref[...], preferred_element_type=jnp.float32)
    fh_ref[...] = fh
    sc_ref[...] = jnp.dot(fh, alr_ref[...], preferred_element_type=jnp.float32)


# ----------------------------------------------------------------------------
# Stage 2: masked edge-softmax + aggregation, streamed over (dst, src) blocks
# ----------------------------------------------------------------------------
def _make_attn_kernel(num_heads, out_feats, src_tile):
    H, D, TS = num_heads, out_feats, src_tile

    def kernel(fh_ref, elt_ref, er_ref, adj_ref, o_ref, m_sc, l_sc, acc_sc):
        # fh_ref:  (N, H*D)       resident projected features (all src nodes)
        # elt_ref: (H, N)         resident source scores (pre-transposed)
        # er_ref:  (T_dst, H)     destination scores for this dst block
        # adj_ref: (T_dst, T_src) int8, adj[v, u] = 1 iff edge u -> v (streamed)
        # o_ref:   (T_dst, H*D)   lane-dense output block
        # m_sc/l_sc: (T_dst, H)   online-softmax running max / denom
        # acc_sc:  (T_dst, H*D)   running weighted sum
        j = pl.program_id(1)

        @pl.when(j == 0)
        def _():
            m_sc[...] = jnp.full_like(m_sc, MASK_NEG)
            l_sc[...] = jnp.zeros_like(l_sc)
            acc_sc[...] = jnp.zeros_like(acc_sc)

        # One additive mask bias per tile, shared by all heads: int8 compared
        # directly (no full f32 copy of the adjacency, no per-head select).
        bias = jnp.where(adj_ref[...] != 0, jnp.float32(0.0), jnp.float32(MASK_NEG))

        src0 = pl.multiple_of(j * TS, TS)
        fh = fh_ref[pl.ds(src0, TS), :]           # (T_src, H*D) from resident VMEM
        el_blk = elt_ref[:, pl.ds(src0, TS)]      # (H, T_src)

        for h in range(H):                        # H is small & static -> unrolled
            el_row = el_blk[h:h + 1, :]           # (1, T_src)
            er_col = er_ref[:, h:h + 1]           # (T_dst, 1)
            e = er_col + el_row                   # (T_dst, T_src)
            e = jnp.maximum(e, NEG_SLOPE * e)     # leaky_relu (no select)
            e = e + bias                          # masked logits

            m_prev = m_sc[:, h:h + 1]             # (T_dst, 1)
            m_new = jnp.maximum(m_prev, jnp.max(e, axis=-1, keepdims=True))
            alpha = jnp.exp(m_prev - m_new)       # rescale of previously seen blocks
            p = jnp.exp(e - m_new)                # masked entries underflow to exactly 0

            l_sc[:, h:h + 1] = alpha * l_sc[:, h:h + 1] + jnp.sum(p, axis=-1, keepdims=True)
            acc_sc[:, h * D:(h + 1) * D] = (
                alpha * acc_sc[:, h * D:(h + 1) * D]
                + jnp.dot(p, fh[:, h * D:(h + 1) * D],
                          preferred_element_type=jnp.float32))
            m_sc[:, h:h + 1] = m_new

        @pl.when(j == pl.num_programs(1) - 1)
        def _():
            inv = pl.reciprocal(jnp.maximum(l_sc[...], 1e-30), approx=False)   # (T_dst, H)
            scale = jnp.concatenate(
                [jnp.broadcast_to(inv[:, h:h + 1], (inv.shape[0], D)) for h in range(H)],
                axis=-1)                                                        # (T_dst, H*D)
            o_ref[...] = (acc_sc[...] * scale).astype(o_ref.dtype)              # single lane-dense store

    return kernel


def _pick_tile(n, pref):
    """Largest tile <= pref that divides n (falls back to full n for ragged sizes)."""
    t = min(pref, n)
    if n % t == 0:
        return t
    # TODO(synk): pad / mask ragged node counts instead of falling back to full N.
    return n


def _default_dst_tile():
    # v7x has 64 MiB VMEM per TensorCore -> T_dst = 256; v5e/v6e (128 MiB) -> 512.
    try:
        vmem = pltpu.get_tpu_info().vmem_capacity_bytes
    except Exception:
        vmem = 64 * 1024 * 1024
    return 512 if vmem >= (100 << 20) else 256


def gat_conv_forward(feat, w, attn_l, attn_r, adj, *, dst_tile=None, src_tile=512):
    """feat: (N, F_in); w: (H, F_in, D); attn_l/r: (H, 1, D); adj: (N, N) {0,1}
    with adj[v, u] = 1 iff edge u -> v.  Returns (N, H, D) (matches the module)."""
    N, F_in = feat.shape
    H, _, D = w.shape

    # Tiny one-time parameter-side reshapes (XLA):
    w_fused = jnp.transpose(w, (1, 0, 2)).reshape(F_in, H * D)               # (F_in, H*D)
    eye_h = jnp.eye(H, dtype=w.dtype)
    al_blk = (attn_l[:, 0, :, None] * eye_h[:, None, :]).reshape(H * D, H)
    ar_blk = (attn_r[:, 0, :, None] * eye_h[:, None, :]).reshape(H * D, H)
    alr = jnp.concatenate([al_blk, ar_blk], axis=1)                          # (H*D, 2H)
    adj_i8 = adj.astype(jnp.int8)            # the O(N^2) operand stays int8 end-to-end

    vmem = pl.BlockSpec(memory_space=pltpu.MemorySpace.VMEM)

    # ---- Stage 1: projection (O(N*F_in*H*D) FLOPs, O(N) memory) -------------
    # TODO(synk): tile this over node-row blocks for very large N; it is not the
    # O(N^2) bottleneck so it stays a single un-gridded call here.
    fh, scores = pl.pallas_call(
        _proj_kernel,
        out_shape=(jax.ShapeDtypeStruct((N, H * D), jnp.float32),
                   jax.ShapeDtypeStruct((N, 2 * H), jnp.float32)),
        in_specs=[vmem, vmem, vmem],
        out_specs=(vmem, vmem),
    )(feat.astype(jnp.float32), w_fused, alr)

    el_t = scores[:, :H].T                    # (H, N)  tiny XLA transpose between calls
    er = scores[:, H:]                        # (N, H)

    # ---- Stage 2: streamed masked softmax + aggregation ---------------------
    if dst_tile is None:
        dst_tile = _default_dst_tile()
    t_dst = _pick_tile(N, dst_tile)
    t_src = _pick_tile(N, src_tile)
    n_dst, n_src = N // t_dst, N // t_src

    grid_spec = pltpu.PrefetchScalarGridSpec(
        num_scalar_prefetch=0,
        grid=(n_dst, n_src),                  # reduction-over-src axis last
        in_specs=[
            pl.BlockSpec((N, H * D), lambda i, j: (0, 0)),       # fh: resident, loaded once
            pl.BlockSpec((H, N), lambda i, j: (0, 0)),           # el^T: resident
            pl.BlockSpec((t_dst, H), lambda i, j: (i, 0)),       # er by dst block
            pl.BlockSpec((t_dst, t_src), lambda i, j: (i, j)),   # adj int8 stream
        ],
        out_specs=pl.BlockSpec((t_dst, H * D), lambda i, j: (i, 0)),  # src-independent (accumulator)
        scratch_shapes=[
            pltpu.VMEM((t_dst, H), jnp.float32),        # m
            pltpu.VMEM((t_dst, H), jnp.float32),        # l
            pltpu.VMEM((t_dst, H * D), jnp.float32),    # acc
        ],
    )

    # Explicit VMEM budget (review): resident fh/el^T + double-buffered streamed
    # blocks + online-softmax scratch + temporaries, capped at v7x's 64 MiB.
    vmem_need = int(
        N * H * D * 4 + H * N * 4
        + 2 * (t_dst * t_src + t_dst * H * 4 + t_dst * H * D * 4)
        + t_dst * H * 8 + t_dst * H * D * 4
        + 8 * t_dst * t_src * 4
        + (4 << 20))
    vmem_limit = min(max(vmem_need, 32 << 20), 64 << 20)

    out_slab = pl.pallas_call(
        _make_attn_kernel(H, D, t_src),
        out_shape=jax.ShapeDtypeStruct((N, H * D), jnp.float32),
        grid_spec=grid_spec,
        compiler_params=pltpu.CompilerParams(
            dimension_semantics=("parallel", "arbitrary"),
            vmem_limit_bytes=vmem_limit),
    )(fh, el_t, er, adj_i8)

    # Free row-major reshape: head h, feature d lives at column h*D + d.
    return out_slab.reshape(N, H, D)


def gat_conv_reference(feat, w, attn_l, attn_r, adj):
    """Plain-JAX reference with the original module's semantics (for validation)."""
    H, F_in, D = w.shape
    fh = jnp.einsum("nf,hfd->nhd", feat, w)                     # (N, H, D)
    el = jnp.sum(fh * attn_l[:, 0, :][None], axis=-1)           # (N, H)  src
    er = jnp.sum(fh * attn_r[:, 0, :][None], axis=-1)           # (N, H)  dst
    e = er[:, None, :] + el[None, :, :]                         # (N_dst, N_src, H)
    e = jnp.where(e > 0, e, NEG_SLOPE * e)
    mask = (adj > 0)[:, :, None]
    e_masked = jnp.where(mask, e, MASK_NEG)
    m = jnp.max(e_masked, axis=1, keepdims=True)
    p = jnp.where(mask, jnp.exp(e_masked - m), 0.0)
    a = p / jnp.maximum(jnp.sum(p, axis=1, keepdims=True), 1e-30)
    return jnp.einsum("nuh,uhd->nhd", a, fh)


def xavier_normal(key, shape, fan_in, fan_out, gain):
    std = gain * np.sqrt(2.0 / (fan_in + fan_out))
    return std * jax.random.normal(key, shape, dtype=jnp.float32)


if __name__ == "__main__":
    # Small, module-consistent shapes.
    N = 64        # number of graph nodes
    F_IN = 32     # in_feats
    H = 4         # num_heads
    D = 16        # out_feats

    key = jax.random.PRNGKey(0)
    k_feat, k_w, k_al, k_ar, k_adj = jax.random.split(key, 5)

    gain = float(np.sqrt(2.0))  # nn.init.calculate_gain('relu')

    # fc.weight in torch is (H*D, F_IN); we keep it pre-transposed per head.
    w = xavier_normal(k_w, (H, F_IN, D), fan_in=F_IN, fan_out=H * D, gain=gain)
    attn_l = xavier_normal(k_al, (H, 1, D), fan_in=H * D, fan_out=D, gain=gain)
    attn_r = xavier_normal(k_ar, (H, 1, D), fan_in=H * D, fan_out=D, gain=gain)
    # TODO(synk): fc_v is initialized in the PyTorch module but never used in
    # forward(), so it is intentionally omitted (feat_drop/attn_drop=0,
    # residual=False, activation=None as in the reference config).

    feat = jax.random.normal(k_feat, (N, F_IN), dtype=jnp.float32)

    # Deterministic random adjacency (dst-major) with self-loops so every dst
    # node has at least one incoming edge (required for dropping the post-exp
    # mask, and standard in DGL GAT setups).
    adj = (jax.random.uniform(k_adj, (N, N)) < 0.15).astype(jnp.float32)
    adj = jnp.maximum(adj, jnp.eye(N, dtype=jnp.float32))

    out = gat_conv_forward(feat, w, attn_l, attn_r, adj)
    out = jax.block_until_ready(out)

    ref = gat_conv_reference(feat, w, attn_l, attn_r, adj)
    np.testing.assert_allclose(np.asarray(out), np.asarray(ref),
                               rtol=1e-5, atol=2e-5)

    print("KERNEL_OK")
</pallas_src>

<mosaic_0001>
module attributes {stable_mosaic.version = 11 : i64} {
  func.func @_proj_kernel(%arg0: memref<64x32xf32, #tpu.memory_space<vmem>>, %arg1: memref<32x64xf32, #tpu.memory_space<vmem>>, %arg2: memref<64x8xf32, #tpu.memory_space<vmem>>, %arg3: memref<64x64xf32, #tpu.memory_space<vmem>>, %arg4: memref<64x8xf32, #tpu.memory_space<vmem>>) attributes {dimension_semantics = [], scalar_prefetch = 0 : i64, scratch_operands = 0 : i64, tpu.core_type = #tpu.core_type<tc>} {
    %c0 = arith.constant 0 : index
    %c0_0 = arith.constant 0 : index
    %0 = vector.load %arg0[%c0, %c0_0] : memref<64x32xf32, #tpu.memory_space<vmem>>, vector<64x32xf32>
    %c0_1 = arith.constant 0 : index
    %c0_2 = arith.constant 0 : index
    %1 = vector.load %arg1[%c0_1, %c0_2] : memref<32x64xf32, #tpu.memory_space<vmem>>, vector<32x64xf32>
    %cst = arith.constant dense<0.000000e+00> : vector<64x64xf32>
    %2 = tpu.matmul %0, %1, %cst {dimension_numbers = #tpu.dot_dimension_numbers<[1], [0], [0], [1], [0, 0, 1, 1], [], []>} : vector<64x32xf32>, vector<32x64xf32>, vector<64x64xf32> -> vector<64x64xf32>
    %c0_3 = arith.constant 0 : index
    %c0_4 = arith.constant 0 : index
    %3 = vector.load %arg3[%c0_3, %c0_4] : memref<64x64xf32, #tpu.memory_space<vmem>>, vector<64x64xf32>
    tpu.vector_store %arg3[%c0_3, %c0_4], %2 {strides = array<i32>} : memref<64x64xf32, #tpu.memory_space<vmem>>, vector<64x64xf32>,
    %c0_5 = arith.constant 0 : index
    %c0_6 = arith.constant 0 : index
    %4 = vector.load %arg2[%c0_5, %c0_6] : memref<64x8xf32, #tpu.memory_space<vmem>>, vector<64x8xf32>
    %cst_7 = arith.constant dense<0.000000e+00> : vector<64x8xf32>
    %5 = tpu.matmul %2, %4, %cst_7 {dimension_numbers = #tpu.dot_dimension_numbers<[1], [0], [0], [1], [0, 0, 1, 1], [], []>} : vector<64x64xf32>, vector<64x8xf32>, vector<64x8xf32> -> vector<64x8xf32>
    %c0_8 = arith.constant 0 : index
    %c0_9 = arith.constant 0 : index
    %6 = vector.load %arg4[%c0_8, %c0_9] : memref<64x8xf32, #tpu.memory_space<vmem>>, vector<64x8xf32>
    tpu.vector_store %arg4[%c0_8, %c0_9], %5 {strides = array<i32>} : memref<64x8xf32, #tpu.memory_space<vmem>>, vector<64x8xf32>,
    return
  }
}

</mosaic_0001>

<llo_original>
// kernel: tpu_custom_call.1
$region0: #{tpu_custom_call.1}
  #allocation0 [shape = 'u32[]', space=smem, size = 0x4, offset = 0x4, fixed_abs, tag = 'smem constant byte address 0x4 - core index']
  #allocation1 [shape = 'u32[72,128]{1,0:T(1,128)}', space=vmem, size = 0x9000, scoped, tag = 'internal scratch']
  %s0 = inlined_call_operand.vmem [shape: f32[64,32], index: 0, kind: input, shape index: {}]
  %s1 = inlined_call_operand.vmem [shape: f32[32,64], index: 1, kind: input, shape index: {}]
  %s2 = inlined_call_operand.vmem [shape: f32[64,8], index: 2, kind: input, shape index: {}]
  %s3 = inlined_call_operand.hbm [shape: f32[64,64], index: 3, kind: output, shape index: {0}]
  %s4 = inlined_call_operand.vmem [shape: f32[64,8], index: 4, kind: output, shape index: {1}]
  %5 = xla_tuple %s3, %s4
  %s6 = sld [smem:[#allocation0]]
  $region30: #{tpu_custom_call.1} parent=0
    _
  %s8 = ssub.s32 1, %s6
  %s9 = scalar_select 0, %s8, %s6
  $region1: #{tpu_custom_call.1} parent=0
    #allocation2 [shape = 'u8[32768]{0}', space=vmem, size = 0x8000, scoped, tag = 'output window, operand 0, single buffered']
    #allocation3 [shape = 's32[1]{0}', space=sflag, size = 0x4, scoped, tag = 'scoped memory for tpu_custom_call.1']
    %10 = vsyncpa [#allocation3], 0
    // Predicated region
    $region2: #{tpu_custom_call.1} parent=1 // pred_check
      _
    $region3: #{tpu_custom_call.1} parent=1 // pred_check_branch
      %12 = sbr.rel (0) target = $region5
    $region4: #{tpu_custom_call.1} parent=1 // pred_region
      _
    $region5: #{tpu_custom_call.1} parent=1 // pred_fallthru
      _
    // Predicated region
    $region6: #{tpu_custom_call.1} parent=1 // pred_check
      _
    $region7: #{tpu_custom_call.1} parent=1 // pred_check_branch
      %14 = sbr.rel (0) target = $region9
    $region8: #{tpu_custom_call.1} parent=1 // pred_region
      _
    $region9: #{tpu_custom_call.1} parent=1 // pred_fallthru
      _
    // Predicated region
    $region10: #{tpu_custom_call.1} parent=1 // pred_check
      _
    $region11: #{tpu_custom_call.1} parent=1 // pred_check_branch
      %16 = sbr.rel (0) target = $region13
    $region12: #{tpu_custom_call.1} parent=1 // pred_region
      _
    $region13: #{tpu_custom_call.1} parent=1 // pred_fallthru
      _
    %v17 = vld [vmem:[%s0] sm:$0xff]
    %v18 = vld [vmem:[%s0 + $0x8] sm:$0xff]
    %v19 = vld [vmem:[%s0 + $0x10] sm:$0xff]
    %v20 = vld [vmem:[%s0 + $0x18] sm:$0xff]
    %v21 = vld [vmem:[%s0 + $0x20] sm:$0xff]
    %v22 = vld [vmem:[%s0 + $0x28] sm:$0xff]
    %v23 = vld [vmem:[%s0 + $0x30] sm:$0xff]
    %v24 = vld [vmem:[%s0 + $0x38] sm:$0xff]
    %v25 = vld [vmem:[%s1] sm:$0xff]
    %v26 = vld [vmem:[%s1 + $0x8] sm:$0xff]
    %v27 = vld [vmem:[%s1 + $0x10] sm:$0xff]
    %v28 = vld [vmem:[%s1 + $0x18] sm:$0xff]
    %vm29 = vcmask 261120
    %v31 = vsel %vm29, %v17, 0
    %v34 = vsel %vm29, %v18, 0
    %v37 = vsel %vm29, %v19, 0
    %v40 = vsel %vm29, %v20, 0
    %v43 = vsel %vm29, %v21, 0
    %v46 = vsel %vm29, %v22, 0
    %v49 = vsel %vm29, %v23, 0
    %v52 = vsel %vm29, %v24, 0
    %54 = vmatpush.msra.mxu0 0.0
    %55 = vmatpush.msra.mxu0 0.0
    %56 = vmatpush.msra.mxu0 0.0
    %57 = vmatpush.msra.mxu0 0.0
    %58 = vmatpush.msra.mxu0 0.0
    %59 = vmatpush.msra.mxu0 0.0
    %60 = vmatpush.msra.mxu0 0.0
    %61 = vmatpush.msra.mxu0 0.0
    %62 = vmatpush.msra.mxu0 0.0
    %63 = vmatpush.msra.mxu0 0.0
    %64 = vmatpush.msra.mxu0 0.0
    %65 = vmatpush.msra.mxu0 0.0
    %66 = vmatpush.msra.mxu0 %v28
    %67 = vmatpush.msra.mxu0 %v27
    %68 = vmatpush.msra.mxu0 %v26
    %69 = vmatpush.msra.mxu0 %v25
    %70 = vmatmul.f32.gmra.mxu0 %v31
    %v71 = vpop.f32.mrf.mxu0
    %v72 = vadd.f32 0.0, %v71
    %73 = vmatmul.f32.gmra.mxu0 %v34
    %v74 = vpop.f32.mrf.mxu0
    %v75 = vadd.f32 0.0, %v74
    %76 = vmatmul.f32.gmra.mxu0 %v37
    %v77 = vpop.f32.mrf.mxu0
    %v78 = vadd.f32 0.0, %v77
    %79 = vmatmul.f32.gmra.mxu0 %v40
    %v80 = vpop.f32.mrf.mxu0
    %v81 = vadd.f32 0.0, %v80
    %82 = vmatmul.f32.gmra.mxu0 %v43
    %v83 = vpop.f32.mrf.mxu0
    %v84 = vadd.f32 0.0, %v83
    %85 = vmatmul.f32.gmra.mxu0 %v46
    %v86 = vpop.f32.mrf.mxu0
    %v87 = vadd.f32 0.0, %v86
    %88 = vmatmul.f32.gmra.mxu0 %v49
    %v89 = vpop.f32.mrf.mxu0
    %v90 = vadd.f32 0.0, %v89
    %91 = vmatmul.f32.gmra.mxu0 %v52
    %v92 = vpop.f32.mrf.mxu0
    %v93 = vadd.f32 0.0, %v92
    %94 = vdwg.mxu0
    %vm95 = vcmask 523264
    %96 = vst.msk [vmem:[#allocation2] sm:$0xff] %vm95, %v72
    %97 = vst.msk [vmem:[#allocation2 + $0x8] sm:$0xff] %vm95, %v75
    %98 = vst.msk [vmem:[#allocation2 + $0x10] sm:$0xff] %vm95, %v78
    %99 = vst.msk [vmem:[#allocation2 + $0x18] sm:$0xff] %vm95, %v81
    %100 = vst.msk [vmem:[#allocation2 + $0x20] sm:$0xff] %vm95, %v84
    %101 = vst.msk [vmem:[#allocation2 + $0x28] sm:$0xff] %vm95, %v87
    %102 = vst.msk [vmem:[#allocation2 + $0x30] sm:$0xff] %vm95, %v90
    %103 = vst.msk [vmem:[#allocation2 + $0x38] sm:$0xff] %vm95, %v93
    %v104 = vld [vmem:[%s2] sm:$0xff]
    %v105 = vld [vmem:[%s2 + $0x8] sm:$0xff]
    %v106 = vld [vmem:[%s2 + $0x10] sm:$0xff]
    %v107 = vld [vmem:[%s2 + $0x18] sm:$0xff]
    %v108 = vld [vmem:[%s2 + $0x20] sm:$0xff]
    %v109 = vld [vmem:[%s2 + $0x28] sm:$0xff]
    %v110 = vld [vmem:[%s2 + $0x30] sm:$0xff]
    %v111 = vld [vmem:[%s2 + $0x38] sm:$0xff]
    %v113 = vsel %vm95, %v72, 0
    %v116 = vsel %vm95, %v75, 0
    %v119 = vsel %vm95, %v78, 0
    %v122 = vsel %vm95, %v81, 0
    %v125 = vsel %vm95, %v84, 0
    %v128 = vsel %vm95, %v87, 0
    %v131 = vsel %vm95, %v90, 0
    %v134 = vsel %vm95, %v93, 0
    %136 = vmatpush.msra.mxu0 0.0
    %137 = vmatpush.msra.mxu0 0.0
    %138 = vmatpush.msra.mxu0 0.0
    %139 = vmatpush.msra.mxu0 0.0
    %140 = vmatpush.msra.mxu0 0.0
    %141 = vmatpush.msra.mxu0 0.0
    %142 = vmatpush.msra.mxu0 0.0
    %143 = vmatpush.msra.mxu0 0.0
    %144 = vmatpush.msra.mxu0 %v111
    %145 = vmatpush.msra.mxu0 %v110
    %146 = vmatpush.msra.mxu0 %v109
    %147 = vmatpush.msra.mxu0 %v108
    %148 = vmatpush.msra.mxu0 %v107
    %149 = vmatpush.msra.mxu0 %v106
    %150 = vmatpush.msra.mxu0 %v105
    %151 = vmatpush.msra.mxu0 %v104
    %152 = vmatmul.f32.gmra.mxu0 %v113
    %v153 = vpop.f32.mrf.mxu0
    %v154 = vadd.f32 0.0, %v153
    %155 = vmatmul.f32.gmra.mxu0 %v116
    %v156 = vpop.f32.mrf.mxu0
    %v157 = vadd.f32 0.0, %v156
    %158 = vmatmul.f32.gmra.mxu0 %v119
    %v159 = vpop.f32.mrf.mxu0
    %v160 = vadd.f32 0.0, %v159
    %161 = vmatmul.f32.gmra.mxu0 %v122
    %v162 = vpop.f32.mrf.mxu0
    %v163 = vadd.f32 0.0, %v162
    %164 = vmatmul.f32.gmra.mxu0 %v125
    %v165 = vpop.f32.mrf.mxu0
    %v166 = vadd.f32 0.0, %v165
    %167 = vmatmul.f32.gmra.mxu0 %v128
    %v168 = vpop.f32.mrf.mxu0
    %v169 = vadd.f32 0.0, %v168
    %170 = vmatmul.f32.gmra.mxu0 %v131
    %v171 = vpop.f32.mrf.mxu0
    %v172 = vadd.f32 0.0, %v171
    %173 = vmatmul.f32.gmra.mxu0 %v134
    %v174 = vpop.f32.mrf.mxu0
    %v175 = vadd.f32 0.0, %v174
    %176 = vdwg.mxu0
    %vm177 = vcmask 64512
    %178 = vst.msk [vmem:[%s4] sm:$0xff] %vm177, %v154
    %179 = vst.msk [vmem:[%s4 + $0x8] sm:$0xff] %vm177, %v157
    %180 = vst.msk [vmem:[%s4 + $0x10] sm:$0xff] %vm177, %v160
    %181 = vst.msk [vmem:[%s4 + $0x18] sm:$0xff] %vm177, %v163
    %182 = vst.msk [vmem:[%s4 + $0x20] sm:$0xff] %vm177, %v166
    %183 = vst.msk [vmem:[%s4 + $0x28] sm:$0xff] %vm177, %v169
    %184 = vst.msk [vmem:[%s4 + $0x30] sm:$0xff] %vm177, %v172
    %185 = vst.msk [vmem:[%s4 + $0x38] sm:$0xff] %vm177, %v175
    // Predicated region
    $region14: #{tpu_custom_call.1} parent=1 // pred_check
      _
    $region15: #{tpu_custom_call.1} parent=1 // pred_check_branch
      %187 = sbr.rel (0) target = $region17
    $region16: #{tpu_custom_call.1} parent=1 // pred_region
      %189 = vsyncadd [#allocation3], 0
      %s190 = sshll.u32 [#allocation2], 4
      %s191 = int_to_ptr.vmem [resolvable:$true] %s190
      %s192 = sshll.u32 %s3, 4
      %s193 = int_to_ptr.hbm [resolvable:$true] %s192
      %198 = dma.vmem_to_hbm [thread:$0]  %s191, 1024, %s193, [#allocation3], 128, 128, 8
    $region17: #{tpu_custom_call.1} parent=1 // pred_fallthru
      _
    // Predicated region
    $region18: #{tpu_custom_call.1} parent=1 // pred_check
      _
    $region19: #{tpu_custom_call.1} parent=1 // pred_check_branch
      %200 = sbr.rel (0) target = $region21
    $region20: #{tpu_custom_call.1} parent=1 // pred_region
      _
    $region21: #{tpu_custom_call.1} parent=1 // pred_fallthru
      _
    // Predicated region
    $region22: #{tpu_custom_call.1} parent=1 // pred_check
      _
    $region23: #{tpu_custom_call.1} parent=1 // pred_check_branch
      %202 = sbr.rel (0) target = $region25
    $region24: #{tpu_custom_call.1} parent=1 // pred_region
      %204 = dma.done [#allocation3], 1024
    $region25: #{tpu_custom_call.1} parent=1 // pred_fallthru
      _
    // Predicated region
    $region26: #{tpu_custom_call.1} parent=1 // pred_check
      _
    $region27: #{tpu_custom_call.1} parent=1 // pred_check_branch
      %206 = sbr.rel (0) target = $region29
    $region28: #{tpu_custom_call.1} parent=1 // pred_region
      _
    $region29: #{tpu_custom_call.1} parent=1 // pred_fallthru
      _
    %207 = vsyncpa [#allocation3], 1

</llo_original>
